<compile_context>
chip_gen: v7x
topology: tpu7x:2x2x1
jax: 0.10.0
libtpu: 0.0.40
codegen_flags: <defaults>
</compile_context>

<pallas_src>
import functools

import jax
import jax.numpy as jnp
from jax.experimental import pallas as pl
from jax.experimental.pallas import tpu as pltpu


def _net_kernel(x_ref, w_ref, o_ref, *, out_m):
    # Single fused MXU contraction: [B, in_m+in_d] @ [in_m+in_d, out_m+out_d]
    s = jnp.dot(x_ref[...], w_ref[...], preferred_element_type=jnp.float32)
    molecular = s[:, :out_m]      # columns 0 .. out_m-1
    denominator = s[:, out_m:]    # columns out_m .. out_m+out_d-1
    # Exact reciprocal + multiply instead of a serialized divide.
    # NOTE: no guard against denominator == 0 (matches the PyTorch module,
    # which would also produce inf/nan silently).
    o_ref[...] = molecular * pl.reciprocal(denominator, approx=False)


def prepare_fused_weight(w_molecular, w_denominator):
    """One-time, init-side parameter prep (NOT in the per-call path).

    w_molecular / w_denominator are PyTorch-convention [out, in] weights.
    Returns the block-diagonal [in_m + in_d, out_m + out_d] matrix so that
    a single x_cat @ W_fused yields [molecular | denominator].
    """
    out_m, in_m = w_molecular.shape
    out_d, in_d = w_denominator.shape
    w = jnp.zeros((in_m + in_d, out_m + out_d), jnp.float32)
    w = w.at[:in_m, :out_m].set(w_molecular.T.astype(jnp.float32))
    w = w.at[in_m:, out_m:].set(w_denominator.T.astype(jnp.float32))
    return w


@functools.partial(jax.jit, static_argnames=("out_m",))
def net_forward(molecular_features, denominator_features, w_fused, out_m):
    """Forward pass. `w_fused` is the pre-built block-diagonal weight."""
    B = molecular_features.shape[0]
    # Per-call feature concat along the lane axis (tiny, fuses in XLA).
    x_cat = jnp.concatenate(
        [molecular_features.astype(jnp.float32),
         denominator_features.astype(jnp.float32)], axis=1)

    kernel = functools.partial(_net_kernel, out_m=out_m)
    return pl.pallas_call(
        kernel,
        out_shape=jax.ShapeDtypeStruct((B, out_m), jnp.float32),
        # Grid-less call: whole arrays live in VMEM, no pipeline machinery.
        in_specs=[
            pl.BlockSpec(memory_space=pltpu.MemorySpace.VMEM),
            pl.BlockSpec(memory_space=pltpu.MemorySpace.VMEM),
        ],
        out_specs=pl.BlockSpec(memory_space=pltpu.MemorySpace.VMEM),
    )(x_cat, w_fused)


if __name__ == "__main__":
    # Module hyper-params (shapes implied by __init__):
    #   input_molecular_nb=16, output_molecular_nb=32,
    #   input_denominator_nb=16, output_denominator_nb=32
    B = 8
    in_m, out_m = 16, 32
    in_d, out_d = 16, 32

    key = jax.random.PRNGKey(0)
    k1, k2, k3, k4 = jax.random.split(key, 4)

    # Deterministic parameter init (PyTorch Linear default: U(-1/sqrt(in), 1/sqrt(in))).
    bound_m = 1.0 / (in_m ** 0.5)
    bound_d = 1.0 / (in_d ** 0.5)
    w_molecular = jax.random.uniform(k1, (out_m, in_m), jnp.float32,
                                     minval=-bound_m, maxval=bound_m)
    # Keep denominator weights/features strictly positive to avoid divide-by-zero.
    w_denominator = jax.random.uniform(k2, (out_d, in_d), jnp.float32,
                                       minval=0.1, maxval=bound_d + 0.1)

    molecular_features = jax.random.normal(k3, (B, in_m), jnp.float32)
    denominator_features = jax.random.uniform(k4, (B, in_d), jnp.float32,
                                              minval=0.5, maxval=1.5)

    # One-time parameter prep (outside the per-call hot path).
    w_fused = prepare_fused_weight(w_molecular, w_denominator)

    y = net_forward(molecular_features, denominator_features, w_fused, out_m)
    y = jax.block_until_ready(y)

    # Reference check in plain JAX.
    y_ref = (molecular_features @ w_molecular.T) / (denominator_features @ w_denominator.T)
    assert y.shape == (B, out_m)
    assert jnp.allclose(y, y_ref, rtol=1e-5, atol=1e-5)

    print("KERNEL_OK")
</pallas_src>

<mosaic_0001>
module attributes {stable_mosaic.version = 11 : i64} {
  func.func @_net_kernel(%arg0: memref<8x32xf32, #tpu.memory_space<vmem>>, %arg1: memref<32x64xf32, #tpu.memory_space<vmem>>, %arg2: memref<8x32xf32, #tpu.memory_space<vmem>>) attributes {dimension_semantics = [], scalar_prefetch = 0 : i64, scratch_operands = 0 : i64, tpu.core_type = #tpu.core_type<tc>} {
    %c0 = arith.constant 0 : index
    %c0_0 = arith.constant 0 : index
    %0 = vector.load %arg0[%c0, %c0_0] : memref<8x32xf32, #tpu.memory_space<vmem>>, vector<8x32xf32>
    %c0_1 = arith.constant 0 : index
    %c0_2 = arith.constant 0 : index
    %1 = vector.load %arg1[%c0_1, %c0_2] : memref<32x64xf32, #tpu.memory_space<vmem>>, vector<32x64xf32>
    %cst = arith.constant dense<0.000000e+00> : vector<8x64xf32>
    %2 = tpu.matmul %0, %1, %cst {dimension_numbers = #tpu.dot_dimension_numbers<[1], [0], [0], [1], [0, 0, 1, 1], [], []>} : vector<8x32xf32>, vector<32x64xf32>, vector<8x64xf32> -> vector<8x64xf32>
    %3 = vector.extract_strided_slice %2 {offsets = [0, 0], sizes = [8, 32], strides = [1, 1]} : vector<8x64xf32> to vector<8x32xf32>
    %4 = vector.extract_strided_slice %2 {offsets = [0, 32], sizes = [8, 32], strides = [1, 1]} : vector<8x64xf32> to vector<8x32xf32>
    %5 = tpu.reciprocal %4 : vector<8x32xf32> -> vector<8x32xf32>
    %6 = arith.mulf %3, %5 : vector<8x32xf32>
    %c0_3 = arith.constant 0 : index
    %c0_4 = arith.constant 0 : index
    %7 = vector.load %arg2[%c0_3, %c0_4] : memref<8x32xf32, #tpu.memory_space<vmem>>, vector<8x32xf32>
    tpu.vector_store %arg2[%c0_3, %c0_4], %6 {strides = array<i32>} : memref<8x32xf32, #tpu.memory_space<vmem>>, vector<8x32xf32>,
    return
  }
}

</mosaic_0001>

<llo_original>
// kernel: net_forward.1
$region0: #{net_forward.1}
  #allocation0 [shape = 'u32[]', space=smem, size = 0x4, offset = 0x4, fixed_abs, tag = 'smem constant byte address 0x4 - core index']
  #allocation1 [shape = 'u32[144,128]{1,0:T(1,128)}', space=vmem, size = 0x12000, scoped, tag = 'internal scratch']
  %s0 = inlined_call_operand.vmem [shape: f32[8,32], index: 0, kind: input, shape index: {}]
  %s1 = inlined_call_operand.hbm [shape: f32[32,64], index: 1, kind: input, shape index: {}]
  %s2 = inlined_call_operand.hbm [shape: f32[8,32], index: 2, kind: output, shape index: {}]
  %s3 = sld [smem:[#allocation0]]
  $region22: #{net_forward.1} parent=0
    _
  %s5 = ssub.s32 1, %s3
  %s6 = scalar_select 0, %s5, %s3
  $region1: #{net_forward.1} parent=0
    #allocation2 [shape = 'u8[16384]{0}', space=vmem, size = 0x4000, scoped, tag = 'input window, operand 1, single buffered']
    #allocation3 [shape = 's32[1]{0}', space=sflag, size = 0x4, scoped, tag = 'scoped memory for net_forward.1']
    #allocation4 [shape = 's32[1]{0}', space=sflag, size = 0x4, scoped, tag = 'scoped memory for net_forward.1']
    #allocation5 [shape = 'u8[4096]{0}', space=vmem, size = 0x1000, scoped, tag = 'output window, operand 0, single buffered']
    %7 = vsyncpa [#allocation3], 0
    %8 = vsyncpa [#allocation4], 0
    // Predicated region
    $region2: #{net_forward.1} parent=1 // pred_check
      _
    $region3: #{net_forward.1} parent=1 // pred_check_branch
      %10 = sbr.rel (0) target = $region5
    $region4: #{net_forward.1} parent=1 // pred_region
      _
    $region5: #{net_forward.1} parent=1 // pred_fallthru
      _
    // Predicated region
    $region6: #{net_forward.1} parent=1 // pred_check
      _
    $region7: #{net_forward.1} parent=1 // pred_check_branch
      %12 = sbr.rel (0) target = $region9
    $region8: #{net_forward.1} parent=1 // pred_region
      %s14 = ssub.s32 512, 512
      %15 = vsyncadd [#allocation3], %s14
      %s16 = sshll.u32 [#allocation2], 4
      %s17 = int_to_ptr.vmem [resolvable:$true] %s16
      %22 = dma.hbm_to_vmem [thread:$0]  %s1, 512, %s17, [#allocation3], 128, 128, 8
    $region9: #{net_forward.1} parent=1 // pred_fallthru
      _
    // Predicated region
    $region10: #{net_forward.1} parent=1 // pred_check
      _
    $region11: #{net_forward.1} parent=1 // pred_check_branch
      %24 = sbr.rel (0) target = $region13
    $region12: #{net_forward.1} parent=1 // pred_region
      %25 = dma.done [#allocation3], 512
    $region13: #{net_forward.1} parent=1 // pred_fallthru
      _
    %v26 = vld [vmem:[%s0] sm:$0xff]
    %v27 = vld [vmem:[#allocation2] sm:$0xff]
    %v28 = vld [vmem:[#allocation2 + $0x8] sm:$0xff]
    %v29 = vld [vmem:[#allocation2 + $0x10] sm:$0xff]
    %v30 = vld [vmem:[#allocation2 + $0x18] sm:$0xff]
    %vm31 = vcmask 261120
    %v33 = vsel %vm31, %v26, 0
    %35 = vmatprep.subr.mxu0 0.0
    %36 = vmatpush1.msra.mxu0 %v27
    %37 = vmatprep.subr.mxu0 0.0
    %38 = vmatpush1.msra.mxu0 %v28
    %39 = vmatprep.subr.mxu0 0.0
    %40 = vmatpush1.msra.mxu0 %v29
    %41 = vmatprep.subr.mxu0 0.0
    %42 = vmatpush1.msra.mxu0 %v30
    %43 = vmatprep.subr.mxu0 0.0
    %44 = vmatpush1.msra.mxu0 0.0
    %45 = vmatprep.subr.mxu0 0.0
    %46 = vmatpush1.msra.mxu0 0.0
    %47 = vmatprep.subr.mxu0 0.0
    %48 = vmatpush1.msra.mxu0 0.0
    %49 = vmatprep.subr.mxu0 0.0
    %50 = vmatpush1.msra.mxu0 0.0
    %51 = vmatprep.subr.mxu0 0.0
    %52 = vmatpush1.msra.mxu0 0.0
    %53 = vmatprep.subr.mxu0 0.0
    %54 = vmatpush1.msra.mxu0 0.0
    %55 = vmatprep.subr.mxu0 0.0
    %56 = vmatpush1.msra.mxu0 0.0
    %57 = vmatprep.subr.mxu0 0.0
    %58 = vmatpush1.msra.mxu0 0.0
    %59 = vmatprep.subr.mxu0 0.0
    %60 = vmatpush1.msra.mxu0 0.0
    %61 = vmatprep.subr.mxu0 0.0
    %62 = vmatpush1.msra.mxu0 0.0
    %63 = vmatprep.subr.mxu0 0.0
    %64 = vmatpush1.msra.mxu0 0.0
    %65 = vmatprep.subr.mxu0 0.0
    %66 = vmatpush1.msra.mxu0 0.0
    %67 = vmatprep.subr.mxu0 0.0
    %68 = vmatpush1.msra.mxu0 0.0
    %69 = vmatprep.subr.mxu0 0.0
    %70 = vmatpush1.msra.mxu0 0.0
    %71 = vmatprep.subr.mxu0 0.0
    %72 = vmatpush1.msra.mxu0 0.0
    %73 = vmatprep.subr.mxu0 0.0
    %74 = vmatpush1.msra.mxu0 0.0
    %75 = vmatprep.subr.mxu0 0.0
    %76 = vmatpush1.msra.mxu0 0.0
    %77 = vmatprep.subr.mxu0 0.0
    %78 = vmatpush1.msra.mxu0 0.0
    %79 = vmatprep.subr.mxu0 0.0
    %80 = vmatpush1.msra.mxu0 0.0
    %81 = vmatprep.subr.mxu0 0.0
    %82 = vmatpush1.msra.mxu0 0.0
    %83 = vmatprep.subr.mxu0 0.0
    %84 = vmatpush1.msra.mxu0 0.0
    %85 = vmatprep.subr.mxu0 0.0
    %86 = vmatpush1.msra.mxu0 0.0
    %87 = vmatprep.subr.mxu0 0.0
    %88 = vmatpush1.msra.mxu0 0.0
    %89 = vmatprep.subr.mxu0 0.0
    %90 = vmatpush1.msra.mxu0 0.0
    %91 = vmatprep.subr.mxu0 0.0
    %92 = vmatpush1.msra.mxu0 0.0
    %93 = vmatprep.subr.mxu0 0.0
    %94 = vmatpush1.msra.mxu0 0.0
    %95 = vmatprep.subr.mxu0 0.0
    %96 = vmatpush1.msra.mxu0 0.0
    %97 = vmatprep.subr.mxu0 0.0
    %98 = vmatpush1.msra.mxu0 0.0
    %99 = vmatprep.mubr.f32.mxu0 0.0
    %100 = vmatmul.mubr.f32.gmra.mrb[0].mxu0 %v33
    %v101 = vpop.f32.mrb[0].mxu0
    %v102 = vadd.f32 0.0, %v101
    %v103 = vpop.f32.mrb[0].mxu0
    %104 = vdwg.mxu0
    %v105 = vrcp.pop %v102
    %107 = vrot.lane.b32.xlu0 %v105, 96
    %v108 = vpop.permute.xlu0 %107
    %v110 = vmul.f32 %v102, %v108
    %111 = vst.msk [vmem:[#allocation5] sm:$0xff] %vm31, %v110
    // Predicated region
    $region14: #{net_forward.1} parent=1 // pred_check
      _
    $region15: #{net_forward.1} parent=1 // pred_check_branch
      %113 = sbr.rel (0) target = $region17
    $region16: #{net_forward.1} parent=1 // pred_region
      %s115 = ssub.s32 128, 128
      %116 = vsyncadd [#allocation4], %s115
      %s118 = sshll.u32 [#allocation5], 4
      %s119 = int_to_ptr.vmem [resolvable:$true] %s118
      %121 = dma.vmem_to_hbm [thread:$0]  %s119, 128, %s2, [#allocation4]
    $region17: #{net_forward.1} parent=1 // pred_fallthru
      _
    // Predicated region
    $region18: #{net_forward.1} parent=1 // pred_check
      _
    $region19: #{net_forward.1} parent=1 // pred_check_branch
      %123 = sbr.rel (0) target = $region21
    $region20: #{net_forward.1} parent=1 // pred_region
      %124 = dma.done [#allocation4], 128
    $region21: #{net_forward.1} parent=1 // pred_fallthru
      _
    %125 = vsyncpa [#allocation3], 1
    %126 = vsyncpa [#allocation4], 1

</llo_original>
